<compile_context>
chip_gen: v5e
topology: v5e:2x2
jax: 0.10.0
libtpu: 0.0.40
codegen_flags: <defaults>
</compile_context>

<pallas_src>
import functools

import jax
import jax.numpy as jnp
from jax.experimental import pallas as pl
from jax.experimental.pallas import tpu as pltpu


# --------------------- fused kernel: conv (im2col matmul) + BN (batch stats) + ReLU -----------------
def _fused_conv_bn_relu_kernel(p_ref, w_ref, b_ref, g_ref, beta_ref, o_ref, *, eps, relu):
    # p_ref    : (K9, M)    im2col patches; K9 = Cin*KH*KW, M = N*H*W on the lane axis
    # w_ref    : (Cout, K9) weights, K ordered (ci, kh, kw) -> plain reshape of OIHW
    # b_ref    : (Cout, 1)  conv bias
    # g_ref    : (Cout, 1)  BatchNorm gamma
    # beta_ref : (Cout, 1)  BatchNorm beta
    # o_ref    : (Cout, M)  fused output, lane-dense (M multiple of 128)
    acc = jnp.dot(w_ref[...], p_ref[...], preferred_element_type=jnp.float32)  # (Cout, M)
    acc = acc + b_ref[...]                                  # conv bias (cancels under training BN)

    # Training-mode BatchNorm2d: biased batch statistics over (N, H, W) == the lane axis.
    # Two-pass (mean, then mean of squared deviations) for numerical stability.
    mean = jnp.mean(acc, axis=1, keepdims=True)             # (Cout, 1)
    centered = acc - mean
    var = jnp.mean(centered * centered, axis=1, keepdims=True)

    scale = g_ref[...] / jnp.sqrt(var + eps)                # (Cout, 1)
    y = centered * scale + beta_ref[...]
    if relu:
        y = jnp.maximum(y, 0.0)
    o_ref[...] = y                                          # single lane-dense store


# --------------------- wrapper ------------------------------------------------------------------------
@functools.partial(jax.jit, static_argnames=("pad", "eps", "relu"))
def conv_layer_forward(x_nchw, w_oihw, bias, gamma, beta, *, pad=1, eps=1e-5, relu=True):
    """Conv2d(stride=1) + BatchNorm2d (batch statistics) + optional ReLU.  NCHW in, NCHW out."""
    x = x_nchw.astype(jnp.float32)
    w = w_oihw.astype(jnp.float32)
    N, Cin, H, W = x.shape
    Cout, _, KH, KW = w.shape
    assert KH == 2 * pad + 1 and KW == 2 * pad + 1, "same-size conv expected (kernel = 2*pad + 1)"

    K9 = Cin * KH * KW
    M = N * H * W

    # Build the im2col patch matrix in the wrapper (9 static shifted windows; XLA fuses the pad,
    # slices and packing).  Layout: rows = (ci, kh, kw), cols = (n, h, w) -> the kernel sees a
    # lane-dense (K9, M) operand and the weight is a plain reshape of the OIHW tensor.
    xp = jnp.pad(x, ((0, 0), (0, 0), (pad, pad), (pad, pad)))            # (N, Cin, Hp, Wp)
    windows = [xp[:, :, kh:kh + H, kw:kw + W]                            # each (N, Cin, H, W)
               for kh in range(KH) for kw in range(KW)]
    patches = jnp.stack(windows, axis=2)                                 # (N, Cin, KH*KW, H, W)
    patches_t = jnp.transpose(patches, (1, 2, 0, 3, 4)).reshape(K9, M)   # (K9, M)

    w_mat = w.reshape(Cout, K9)                                          # (ci, kh, kw) ordering
    b_col = bias.astype(jnp.float32).reshape(Cout, 1)
    g_col = gamma.astype(jnp.float32).reshape(Cout, 1)
    beta_col = beta.astype(jnp.float32).reshape(Cout, 1)

    out_cm = pl.pallas_call(
        functools.partial(_fused_conv_bn_relu_kernel, eps=eps, relu=relu),
        out_shape=jax.ShapeDtypeStruct((Cout, M), jnp.float32),
        grid_spec=pltpu.PrefetchScalarGridSpec(
            num_scalar_prefetch=0,
            grid=(1,),                                                   # single fused step
            in_specs=[
                pl.BlockSpec((K9, M), lambda i: (0, 0)),                 # patches (full array)
                pl.BlockSpec((Cout, K9), lambda i: (0, 0)),              # weights
                pl.BlockSpec((Cout, 1), lambda i: (0, 0)),               # conv bias
                pl.BlockSpec((Cout, 1), lambda i: (0, 0)),               # gamma
                pl.BlockSpec((Cout, 1), lambda i: (0, 0)),               # beta
            ],
            out_specs=pl.BlockSpec((Cout, M), lambda i: (0, 0)),
        ),
        compiler_params=pltpu.CompilerParams(
            dimension_semantics=("arbitrary",)),
    )(patches_t, w_mat, b_col, g_col, beta_col)

    # (Cout, N*H*W) -> NCHW; cheap XLA transpose of the final 16 KiB.
    return jnp.transpose(out_cm.reshape(Cout, N, H, W), (1, 0, 2, 3))


# --------------------- reference (plain JAX) ---------------------------------------------------------
def _reference(x_nchw, w_oihw, bias, gamma, beta, eps=1e-5, relu=True):
    y = jax.lax.conv_general_dilated(
        x_nchw, w_oihw, window_strides=(1, 1), padding=((1, 1), (1, 1)),
        dimension_numbers=("NCHW", "OIHW", "NCHW"))
    y = y + bias.reshape(1, -1, 1, 1)
    mean = y.mean(axis=(0, 2, 3), keepdims=True)
    var = ((y - mean) ** 2).mean(axis=(0, 2, 3), keepdims=True)
    y = (y - mean) / jnp.sqrt(var + eps)
    y = y * gamma.reshape(1, -1, 1, 1) + beta.reshape(1, -1, 1, 1)
    if relu:
        y = jnp.maximum(y, 0.0)
    return y


if __name__ == "__main__":
    N, Cin, Cout, H, W = 2, 4, 8, 16, 16
    key = jax.random.PRNGKey(0)
    kx, kw, kb = jax.random.split(key, 3)

    x = jax.random.normal(kx, (N, Cin, H, W), dtype=jnp.float32)
    # Conv2d params (deterministic synthetic init, PyTorch OIHW layout)
    w = 0.1 * jax.random.normal(kw, (Cout, Cin, 3, 3), dtype=jnp.float32)
    b = 0.1 * jax.random.normal(kb, (Cout,), dtype=jnp.float32)
    # BatchNorm2d params at default init
    gamma = jnp.ones((Cout,), jnp.float32)
    beta = jnp.zeros((Cout,), jnp.float32)

    out = conv_layer_forward(x, w, b, gamma, beta, relu=True)
    out = jax.block_until_ready(out)

    ref = _reference(x, w, b, gamma, beta, relu=True)
    assert out.shape == (N, Cout, H, W)
    assert jnp.max(jnp.abs(out - ref)) < 1e-4, "mismatch vs reference"

    print("KERNEL_OK")
</pallas_src>

<mosaic_0001>
module attributes {stable_mosaic.version = 11 : i64} {
  func.func @_fused_conv_bn_relu_kernel(%arg0: i32, %arg1: memref<36x512xf32, #tpu.memory_space<vmem>>, %arg2: memref<8x36xf32, #tpu.memory_space<vmem>>, %arg3: memref<8x1xf32, #tpu.memory_space<vmem>>, %arg4: memref<8x1xf32, #tpu.memory_space<vmem>>, %arg5: memref<8x1xf32, #tpu.memory_space<vmem>>, %arg6: memref<8x512xf32, #tpu.memory_space<vmem>>) attributes {dimension_semantics = [#tpu.dimension_semantics<arbitrary>], iteration_bounds = array<i64: 1>, scalar_prefetch = 0 : i64, scratch_operands = 0 : i64, tpu.core_type = #tpu.core_type<tc>, window_params = [{pipeline_mode = #tpu.pipeline_mode<synchronous>, transform_indices = @transform_0, window_bounds = array<i64: 36, 512>}, {pipeline_mode = #tpu.pipeline_mode<synchronous>, transform_indices = @transform_1, window_bounds = array<i64: 8, 36>}, {pipeline_mode = #tpu.pipeline_mode<synchronous>, transform_indices = @transform_2, window_bounds = array<i64: 8, 1>}, {pipeline_mode = #tpu.pipeline_mode<synchronous>, transform_indices = @transform_3, window_bounds = array<i64: 8, 1>}, {pipeline_mode = #tpu.pipeline_mode<synchronous>, transform_indices = @transform_4, window_bounds = array<i64: 8, 1>}, {pipeline_mode = #tpu.pipeline_mode<synchronous>, transform_indices = @transform_5, window_bounds = array<i64: 8, 512>}]} {
    %c0 = arith.constant 0 : index
    %c0_0 = arith.constant 0 : index
    %0 = vector.load %arg2[%c0, %c0_0] : memref<8x36xf32, #tpu.memory_space<vmem>>, vector<8x36xf32>
    %c0_1 = arith.constant 0 : index
    %c0_2 = arith.constant 0 : index
    %1 = vector.load %arg1[%c0_1, %c0_2] : memref<36x512xf32, #tpu.memory_space<vmem>>, vector<36x512xf32>
    %cst = arith.constant dense<0.000000e+00> : vector<8x512xf32>
    %2 = tpu.matmul %0, %1, %cst {dimension_numbers = #tpu.dot_dimension_numbers<[1], [0], [0], [1], [0, 0, 1, 1], [], []>} : vector<8x36xf32>, vector<36x512xf32>, vector<8x512xf32> -> vector<8x512xf32>
    %c0_3 = arith.constant 0 : index
    %c0_4 = arith.constant 0 : index
    %3 = vector.load %arg3[%c0_3, %c0_4] : memref<8x1xf32, #tpu.memory_space<vmem>>, vector<8x1xf32>
    %4 = vector.broadcast %3 : vector<8x1xf32> to vector<8x512xf32>
    %5 = arith.addf %2, %4 : vector<8x512xf32>
    %cst_5 = arith.constant dense<0.000000e+00> : vector<8xf32>
    %6 = vector.multi_reduction <add>, %5, %cst_5 [1] : vector<8x512xf32> to vector<8xf32>
    %7 = vector.shape_cast %6 : vector<8xf32> to vector<8x1xf32>
    %cst_6 = arith.constant 5.120000e+02 : f32
    %8 = vector.broadcast %cst_6 : f32 to vector<8x1xf32>
    %9 = arith.divf %7, %8 : vector<8x1xf32>
    %10 = vector.broadcast %9 : vector<8x1xf32> to vector<8x512xf32>
    %11 = arith.subf %5, %10 : vector<8x512xf32>
    %12 = arith.mulf %11, %11 : vector<8x512xf32>
    %cst_7 = arith.constant dense<0.000000e+00> : vector<8xf32>
    %13 = vector.multi_reduction <add>, %12, %cst_7 [1] : vector<8x512xf32> to vector<8xf32>
    %14 = vector.shape_cast %13 : vector<8xf32> to vector<8x1xf32>
    %cst_8 = arith.constant 5.120000e+02 : f32
    %15 = vector.broadcast %cst_8 : f32 to vector<8x1xf32>
    %16 = arith.divf %14, %15 : vector<8x1xf32>
    %c0_9 = arith.constant 0 : index
    %c0_10 = arith.constant 0 : index
    %17 = vector.load %arg4[%c0_9, %c0_10] : memref<8x1xf32, #tpu.memory_space<vmem>>, vector<8x1xf32>
    %cst_11 = arith.constant 9.99999974E-6 : f32
    %18 = vector.broadcast %cst_11 : f32 to vector<8x1xf32>
    %19 = arith.addf %16, %18 : vector<8x1xf32>
    %20 = math.sqrt %19 : vector<8x1xf32>
    %21 = arith.divf %17, %20 : vector<8x1xf32>
    %22 = vector.broadcast %21 : vector<8x1xf32> to vector<8x512xf32>
    %23 = arith.mulf %11, %22 : vector<8x512xf32>
    %c0_12 = arith.constant 0 : index
    %c0_13 = arith.constant 0 : index
    %24 = vector.load %arg5[%c0_12, %c0_13] : memref<8x1xf32, #tpu.memory_space<vmem>>, vector<8x1xf32>
    %25 = vector.broadcast %24 : vector<8x1xf32> to vector<8x512xf32>
    %26 = arith.addf %23, %25 : vector<8x512xf32>
    %cst_14 = arith.constant 0.000000e+00 : f32
    %27 = vector.broadcast %cst_14 : f32 to vector<8x512xf32>
    %28 = arith.maximumf %26, %27 : vector<8x512xf32>
    %c0_15 = arith.constant 0 : index
    %c0_16 = arith.constant 0 : index
    %29 = vector.load %arg6[%c0_15, %c0_16] : memref<8x512xf32, #tpu.memory_space<vmem>>, vector<8x512xf32>
    tpu.vector_store %arg6[%c0_15, %c0_16], %28 {strides = array<i32>} : memref<8x512xf32, #tpu.memory_space<vmem>>, vector<8x512xf32>,
    return
  }
  func.func @transform_0(%arg0: i32) -> (i32, i32) {
    %c0_i32 = arith.constant 0 : i32
    %c0_i32_0 = arith.constant 0 : i32
    %c0_i32_1 = arith.constant 0 : i32
    return %c0_i32, %c0_i32_0 : i32, i32
  }
  func.func @transform_1(%arg0: i32) -> (i32, i32) {
    %c0_i32 = arith.constant 0 : i32
    %c0_i32_0 = arith.constant 0 : i32
    %c0_i32_1 = arith.constant 0 : i32
    return %c0_i32, %c0_i32_0 : i32, i32
  }
  func.func @transform_2(%arg0: i32) -> (i32, i32) {
    %c0_i32 = arith.constant 0 : i32
    %c0_i32_0 = arith.constant 0 : i32
    %c0_i32_1 = arith.constant 0 : i32
    return %c0_i32, %c0_i32_0 : i32, i32
  }
  func.func @transform_3(%arg0: i32) -> (i32, i32) {
    %c0_i32 = arith.constant 0 : i32
    %c0_i32_0 = arith.constant 0 : i32
    %c0_i32_1 = arith.constant 0 : i32
    return %c0_i32, %c0_i32_0 : i32, i32
  }
  func.func @transform_4(%arg0: i32) -> (i32, i32) {
    %c0_i32 = arith.constant 0 : i32
    %c0_i32_0 = arith.constant 0 : i32
    %c0_i32_1 = arith.constant 0 : i32
    return %c0_i32, %c0_i32_0 : i32, i32
  }
  func.func @transform_5(%arg0: i32) -> (i32, i32) {
    %c0_i32 = arith.constant 0 : i32
    %c0_i32_0 = arith.constant 0 : i32
    %c0_i32_1 = arith.constant 0 : i32
    return %c0_i32, %c0_i32_0 : i32, i32
  }
}

</mosaic_0001>

<llo_original>
// kernel: conv_layer_forward.1
$region0: #{conv_layer_forward.1}
  #allocation0 [shape = 'u32[]', space=smem, size = 0x4, offset = 0x4, fixed_abs, tag = 'smem constant byte address 0x4 - core index']
  #allocation1 [shape = 'u32[72,128]{1,0:T(1,128)}', space=vmem, size = 0x9000, scoped, tag = 'internal scratch']
  %s0 = inlined_call_operand.vmem [shape: f32[36,512], index: 0, kind: input, shape index: {}]
  %s1 = inlined_call_operand.vmem [shape: f32[8,36], index: 1, kind: input, shape index: {}]
  %s2 = inlined_call_operand.vmem [shape: f32[8,1], index: 2, kind: input, shape index: {}]
  %s3 = inlined_call_operand.vmem [shape: f32[8,1], index: 3, kind: input, shape index: {}]
  %s4 = inlined_call_operand.vmem [shape: f32[8,1], index: 4, kind: input, shape index: {}]
  %s5 = inlined_call_operand.vmem [shape: f32[8,512], index: 5, kind: output, shape index: {}]
  %s6 = sld [smem:[#allocation0]]
  $region30: #{conv_layer_forward.1} parent=0
    _
  %s8 = ssub.s32 1, %s6
  %s9 = scalar_select 0, %s8, %s6
  // Predicated region
  $region2: #{conv_layer_forward.1} parent=0 // pred_check
    _
  $region3: #{conv_layer_forward.1} parent=0 // pred_check_branch
    %11 = sbr.rel (0) target = $region5
  $region4: #{conv_layer_forward.1} parent=0 // pred_region
    _
  $region5: #{conv_layer_forward.1} parent=0 // pred_fallthru
    _
  // Predicated region
  $region6: #{conv_layer_forward.1} parent=0 // pred_check
    _
  $region7: #{conv_layer_forward.1} parent=0 // pred_check_branch
    %13 = sbr.rel (0) target = $region9
  $region8: #{conv_layer_forward.1} parent=0 // pred_region
    _
  $region9: #{conv_layer_forward.1} parent=0 // pred_fallthru
    _
  // Predicated region
  $region10: #{conv_layer_forward.1} parent=0 // pred_check
    _
  $region11: #{conv_layer_forward.1} parent=0 // pred_check_branch
    %15 = sbr.rel (0) target = $region13
  $region12: #{conv_layer_forward.1} parent=0 // pred_region
    _
  $region13: #{conv_layer_forward.1} parent=0 // pred_fallthru
    _
  // Predicated region
  $region14: #{conv_layer_forward.1} parent=0 // pred_check
    _
  $region15: #{conv_layer_forward.1} parent=0 // pred_check_branch
    %17 = sbr.rel (0) target = $region17
  $region16: #{conv_layer_forward.1} parent=0 // pred_region
    _
  $region17: #{conv_layer_forward.1} parent=0 // pred_fallthru
    _
  // Predicated region
  $region18: #{conv_layer_forward.1} parent=0 // pred_check
    _
  $region19: #{conv_layer_forward.1} parent=0 // pred_check_branch
    %19 = sbr.rel (0) target = $region21
  $region20: #{conv_layer_forward.1} parent=0 // pred_region
    _
  $region21: #{conv_layer_forward.1} parent=0 // pred_fallthru
    _
  %v20 = vld [vmem:[%s1] sm:$0xff]
  %v21 = vld [vmem:[%s0] sm:$0xff]
  %v22 = vld [vmem:[%s0 + $0x8] sm:$0xff]
  %v23 = vld [vmem:[%s0 + $0x10] sm:$0xff]
  %v24 = vld [vmem:[%s0 + $0x18] sm:$0xff]
  %v25 = vld [vmem:[%s0 + $0x20] sm:$0xff]
  %v26 = vld [vmem:[%s0 + $0x28] sm:$0xff]
  %v27 = vld [vmem:[%s0 + $0x30] sm:$0xff]
  %v28 = vld [vmem:[%s0 + $0x38] sm:$0xff]
  %v29 = vld [vmem:[%s0 + $0x40] sm:$0xff]
  %v30 = vld [vmem:[%s0 + $0x48] sm:$0xff]
  %v31 = vld [vmem:[%s0 + $0x50] sm:$0xff]
  %v32 = vld [vmem:[%s0 + $0x58] sm:$0xff]
  %v33 = vld [vmem:[%s0 + $0x60] sm:$0xff]
  %v34 = vld [vmem:[%s0 + $0x68] sm:$0xff]
  %v35 = vld [vmem:[%s0 + $0x70] sm:$0xff]
  %v36 = vld [vmem:[%s0 + $0x78] sm:$0xff]
  %v37 = vld [vmem:[%s0 + $0x80] sm:$0xf]
  %v38 = vld [vmem:[%s0 + $0x88] sm:$0xf]
  %v39 = vld [vmem:[%s0 + $0x90] sm:$0xf]
  %v40 = vld [vmem:[%s0 + $0x98] sm:$0xf]
  %v41 = vld [vmem:[%s2] sm:$0xff]
  %43 = vset.pattern.permute.xlu0 0
  %44 = vperm.xlu0 %43, %v41
  %v45 = vpop.permute.xlu0 %44
  %vm47 = vcmask 293888
  %v49 = vsel %vm47, %v20, 0
  %vm51 = vcmask 1043456
  %v53 = vsel %vm51, %v37, 0
  %v56 = vsel %vm51, %v38, 0
  %v59 = vsel %vm51, %v39, 0
  %v62 = vsel %vm51, %v40, 0
  %64 = vmatpush.msra.mxu0 0.0
  %65 = vmatpush.msra.mxu0 0.0
  %66 = vmatpush.msra.mxu0 0.0
  %67 = vmatpush.msra.mxu0 0.0
  %68 = vmatpush.msra.mxu0 0.0
  %69 = vmatpush.msra.mxu0 0.0
  %70 = vmatpush.msra.mxu0 0.0
  %71 = vmatpush.msra.mxu0 0.0
  %72 = vmatpush.msra.mxu0 0.0
  %73 = vmatpush.msra.mxu0 0.0
  %74 = vmatpush.msra.mxu0 0.0
  %75 = vmatpush.msra.mxu0 %v53
  %76 = vmatpush.msra.mxu0 %v33
  %77 = vmatpush.msra.mxu0 %v29
  %78 = vmatpush.msra.mxu0 %v25
  %79 = vmatpush.msra.mxu0 %v21
  %80 = vmatmul.f32.gmra.mxu0 %v49
  %v81 = vpop.f32.mrf.mxu0
  %v82 = vadd.f32 %v45, %v81
  %83 = vdwg.mxu0
  %84 = vmatpush.msra.mxu0 0.0
  %85 = vmatpush.msra.mxu0 0.0
  %86 = vmatpush.msra.mxu0 0.0
  %87 = vmatpush.msra.mxu0 0.0
  %88 = vmatpush.msra.mxu0 0.0
  %89 = vmatpush.msra.mxu0 0.0
  %90 = vmatpush.msra.mxu0 0.0
  %91 = vmatpush.msra.mxu0 0.0
  %92 = vmatpush.msra.mxu0 0.0
  %93 = vmatpush.msra.mxu0 0.0
  %94 = vmatpush.msra.mxu0 0.0
  %95 = vmatpush.msra.mxu0 %v56
  %96 = vmatpush.msra.mxu0 %v34
  %97 = vmatpush.msra.mxu0 %v30
  %98 = vmatpush.msra.mxu0 %v26
  %99 = vmatpush.msra.mxu0 %v22
  %100 = vmatmul.f32.gmra.mxu0 %v49
  %v101 = vpop.f32.mrf.mxu0
  %v102 = vadd.f32 %v45, %v101
  %103 = vdwg.mxu0
  %104 = vmatpush.msra.mxu0 0.0
  %105 = vmatpush.msra.mxu0 0.0
  %106 = vmatpush.msra.mxu0 0.0
  %107 = vmatpush.msra.mxu0 0.0
  %108 = vmatpush.msra.mxu0 0.0
  %109 = vmatpush.msra.mxu0 0.0
  %110 = vmatpush.msra.mxu0 0.0
  %111 = vmatpush.msra.mxu0 0.0
  %112 = vmatpush.msra.mxu0 0.0
  %113 = vmatpush.msra.mxu0 0.0
  %114 = vmatpush.msra.mxu0 0.0
  %115 = vmatpush.msra.mxu0 %v59
  %116 = vmatpush.msra.mxu0 %v35
  %117 = vmatpush.msra.mxu0 %v31
  %118 = vmatpush.msra.mxu0 %v27
  %119 = vmatpush.msra.mxu0 %v23
  %120 = vmatmul.f32.gmra.mxu0 %v49
  %v121 = vpop.f32.mrf.mxu0
  %v122 = vadd.f32 %v45, %v121
  %123 = vdwg.mxu0
  %124 = vmatpush.msra.mxu0 0.0
  %125 = vmatpush.msra.mxu0 0.0
  %126 = vmatpush.msra.mxu0 0.0
  %127 = vmatpush.msra.mxu0 0.0
  %128 = vmatpush.msra.mxu0 0.0
  %129 = vmatpush.msra.mxu0 0.0
  %130 = vmatpush.msra.mxu0 0.0
  %131 = vmatpush.msra.mxu0 0.0
  %132 = vmatpush.msra.mxu0 0.0
  %133 = vmatpush.msra.mxu0 0.0
  %134 = vmatpush.msra.mxu0 0.0
  %135 = vmatpush.msra.mxu0 %v62
  %136 = vmatpush.msra.mxu0 %v36
  %137 = vmatpush.msra.mxu0 %v32
  %138 = vmatpush.msra.mxu0 %v28
  %139 = vmatpush.msra.mxu0 %v24
  %140 = vmatmul.f32.gmra.mxu0 %v49
  %v141 = vpop.f32.mrf.mxu0
  %v142 = vadd.f32 %v45, %v141
  %143 = vdwg.mxu0
  %v144 = vadd.f32 %v82, %v102
  %v145 = vadd.f32 %v144, %v122
  %v146 = vadd.f32 %v145, %v142
  %147 = vadd.xlane.f32.xlu0 %v146
  %v148 = vpop.xlane.xlu0 %147
  %v149 = vrcp.pop 512.0
  %v150 = vmul.f32 512.0, %v149
  %v151 = vsub.f32 1.0, %v150
  %v152 = vmul.f32 %v149, %v151
  %v153 = vadd.f32 %v149, %v152
  %vm154 = vweird.f32 %v149
  %v155 = vsel %vm154, %v149, %v153
  %v156 = vmul.f32 %v148, %v155
  %v157 = vsub.f32 %v82, %v156
  %v158 = vsub.f32 %v102, %v156
  %v159 = vsub.f32 %v122, %v156
  %v160 = vsub.f32 %v142, %v156
  %v161 = vmul.f32 %v157, %v157
  %v162 = vmul.f32 %v158, %v158
  %v163 = vmul.f32 %v159, %v159
  %v164 = vmul.f32 %v160, %v160
  %v165 = vadd.f32 %v161, %v162
  %v166 = vadd.f32 %v165, %v163
  %v167 = vadd.f32 %v166, %v164
  %168 = vadd.xlane.f32.xlu0 %v167
  %v169 = vpop.xlane.xlu0 %168
  %v170 = vmul.f32 %v169, %v155
  %v171 = vld [vmem:[%s3] sm:$0xff]
  %v172 = vadd.f32 %v170, 1e-05
  %v173 = vrsqrt.pop %v172
  %v174 = vmul.f32 %v173, %v172
  %v175 = vmul.f32 %v174, %v173
  %v176 = vmul.f32 0.5, %v175
  %v177 = vsub.f32 1.5, %v176
  %v178 = vmul.f32 %v173, %v177
  %v179 = vmul.f32 %v172, %v178
  %vm180 = vcmp.eq.f32.partialorder %v172, inf
  %v181 = vsel %vm180, %v172, %v179
  %vm182 = vcmp.eq.f32.partialorder %v172, 0.0
  %v183 = vand.u32 %v172, 2147483648
  %v184 = vsel %vm182, %v183, %v181
  %v185 = vrcp.pop %v184
  %v186 = vmul.f32 %v184, %v185
  %v187 = vsub.f32 1.0, %v186
  %v188 = vmul.f32 %v185, %v187
  %v189 = vadd.f32 %v185, %v188
  %vm190 = vweird.f32 %v184
  %vm191 = vweird.f32 %v185
  %vm192 = vmor %vm190, %vm191
  %v193 = vsel %vm192, %v185, %v189
  %v194 = vand.u32 2147483647, %v184
  %vm195 = vcmp.eq.f32.partialorder %v194, 8.507059e+37
  %v196 = vand.u32 %v184, 2147483648
  %v197 = vor.u32 1.1754944e-38, %v196
  %v198 = vsel %vm195, %v197, %v193
  %v199 = vmul.f32 %v171, %v198
  %201 = vset.pattern.permute.xlu0 0
  %202 = vperm.xlu0 %201, %v199
  %v203 = vpop.permute.xlu0 %202
  %v205 = vmul.f32 %v157, %v203
  %v206 = vmul.f32 %v158, %v203
  %v207 = vmul.f32 %v159, %v203
  %v208 = vmul.f32 %v160, %v203
  %v209 = vld [vmem:[%s4] sm:$0xff]
  %211 = vset.pattern.permute.xlu0 0
  %212 = vperm.xlu0 %211, %v209
  %v213 = vpop.permute.xlu0 %212
  %v215 = vadd.f32 %v205, %v213
  %v216 = vadd.f32 %v206, %v213
  %v217 = vadd.f32 %v207, %v213
  %v218 = vadd.f32 %v208, %v213
  %v219 = vmax.f32 %v215, 0.0
  %v220 = vmax.f32 %v216, 0.0
  %v221 = vmax.f32 %v217, 0.0
  %v222 = vmax.f32 %v218, 0.0
  %223 = vst [vmem:[%s5] sm:$0xff] %v219
  %224 = vst [vmem:[%s5 + $0x8] sm:$0xff] %v220
  %225 = vst [vmem:[%s5 + $0x10] sm:$0xff] %v221
  %226 = vst [vmem:[%s5 + $0x18] sm:$0xff] %v222
  // Predicated region
  $region22: #{conv_layer_forward.1} parent=0 // pred_check
    _
  $region23: #{conv_layer_forward.1} parent=0 // pred_check_branch
    %228 = sbr.rel (0) target = $region25
  $region24: #{conv_layer_forward.1} parent=0 // pred_region
    _
  $region25: #{conv_layer_forward.1} parent=0 // pred_fallthru
    _
  // Predicated region
  $region26: #{conv_layer_forward.1} parent=0 // pred_check
    _
  $region27: #{conv_layer_forward.1} parent=0 // pred_check_branch
    %230 = sbr.rel (0) target = $region29
  $region28: #{conv_layer_forward.1} parent=0 // pred_region
    _
  $region29: #{conv_layer_forward.1} parent=0 // pred_fallthru
    _

</llo_original>
